<compile_context>
chip_gen: v5e
topology: v5e:2x2
jax: 0.10.0
libtpu: 0.0.40
codegen_flags: <defaults>
</compile_context>

<pallas_src>
import jax
import jax.numpy as jnp
from jax.experimental import pallas as pl
from jax.experimental.pallas import tpu as pltpu

_MIB = 1024 * 1024
# 2 x (input block + output block) (double buffering) must stay under this so
# the kernel fits scoped VMEM on every TPU generation.
_BLOCK_BUDGET = 24 * _MIB
_VMEM_CAP = 48 * _MIB


def _chomp_copy_kernel(x_ref, o_ref):
    # Pure prefix copy along the lane axis.  In the full-extent-L path x_ref
    # holds the whole input length and we keep only its first Lc lanes (static
    # slice); in the L-tiled fallback shapes match and the slice is a no-op.
    o_ref[...] = x_ref[:, : o_ref.shape[-1]]


def _round_up(v, m):
    return -(-v // m) * m


def chomp1d(x, chomp_size, *, target_block_bytes=4 * _MIB,
            min_pallas_lanes=128, _force_l_tiling=False):
    """x: (N, C, L), any dtype.  Returns x[:, :, :L - chomp_size] (same dtype)."""
    n, c, l = x.shape
    if not (0 < chomp_size < l):
        raise ValueError("chomp_size must satisfy 0 < chomp_size < L")
    lc = l - chomp_size

    # Tiny outputs: masked sub-128-lane stores + pallas_call fixed cost lose to
    # a plain XLA slice (or to fusing the crop into the downstream consumer).
    if lc < min_pallas_lanes and not _force_l_tiling:
        return x[:, :, :lc]

    rows = n * c
    ebytes = jnp.dtype(x.dtype).itemsize
    sub = 8 * max(1, 4 // ebytes)          # sublane granularity incl. packing
    x2 = x.reshape(rows, l)                # contiguous collapse, no data move

    # ---- Row (sublane) tile, byte-based: ~target_block_bytes of output/step.
    rt = max(sub, (target_block_bytes // max(lc * ebytes, 1)) // sub * sub)
    if rt >= rows:
        rt = rows                          # full extent (any row count allowed)
    grid_rows = pl.cdiv(rows, rt)
    # Feed both TensorCores on v7x: ensure the parallel row axis has >=2
    # blocks whenever the tensor is big enough to split.
    if grid_rows == 1 and rows >= 2 * sub:
        rt = _round_up((rows + 1) // 2, sub)
        grid_rows = pl.cdiv(rows, rt)

    pair_bytes = (l + lc) * ebytes         # input + output bytes per row
    use_full_l = (not _force_l_tiling) and (2 * sub * pair_bytes <= _BLOCK_BUDGET)

    if use_full_l:
        # Preferred path: no L grid axis.  Shrink the row tile only if needed
        # to keep double-buffered blocks inside the budget (binds only when
        # chomp_size is a large fraction of L).
        rt_cap = max(sub, (_BLOCK_BUDGET // (2 * pair_bytes)) // sub * sub)
        if rt > rt_cap:
            rt = rt_cap
            grid_rows = pl.cdiv(rows, rt)
        grid = (grid_rows,)
        in_specs = [pl.BlockSpec((rt, l), lambda i: (i, 0))]
        out_specs = pl.BlockSpec((rt, lc), lambda i: (i, 0))
        semantics = ("parallel",)
        vmem_need = 2 * rt * pair_bytes
    else:
        # Fallback for very long sequences: lane-dense L tiles (multiples of
        # 128) sized from the same byte budget; last partial tile is masked.
        lt = max(128, (target_block_bytes // max(rt * ebytes, 1)) // 128 * 128)
        lt = min(lt, _round_up(lc, 128))
        grid = (grid_rows, pl.cdiv(lc, lt))
        in_specs = [pl.BlockSpec((rt, lt), lambda i, j: (i, j))]
        out_specs = pl.BlockSpec((rt, lt), lambda i, j: (i, j))
        semantics = ("parallel", "parallel")
        vmem_need = 4 * rt * lt * ebytes

    vmem_limit = int(min(_VMEM_CAP, max(16 * _MIB, (vmem_need * 3) // 2)))

    out2 = pl.pallas_call(
        _chomp_copy_kernel,
        out_shape=jax.ShapeDtypeStruct((rows, lc), x.dtype),
        grid_spec=pltpu.PrefetchScalarGridSpec(
            num_scalar_prefetch=0,
            grid=grid,
            in_specs=in_specs,
            out_specs=out_specs,
        ),
        compiler_params=pltpu.CompilerParams(
            dimension_semantics=semantics,
            vmem_limit_bytes=vmem_limit),
    )(x2)
    return out2.reshape(n, c, lc)


def _reference(x, chomp_size):
    """Pure-JAX reference mirroring the PyTorch forward."""
    return x[:, :, :-chomp_size]


if __name__ == "__main__":
    key = jax.random.PRNGKey(0)
    k1, k2, k3, k4 = jax.random.split(key, 4)

    # 1) Module-sized small shape (batch=2, channels=4, length=16).
    #    Lc < 128 -> default path is a plain XLA slice; also force the Pallas
    #    tiny full-extent path to validate the kernel there too.
    x1 = jax.random.normal(k1, (2, 4, 16), dtype=jnp.float32)
    o1a = jax.block_until_ready(chomp1d(x1, 3))
    o1b = jax.block_until_ready(chomp1d(x1, 3, min_pallas_lanes=0))
    r1 = _reference(x1, 3)
    assert o1a.shape == o1b.shape == (2, 4, 13)
    assert o1a.dtype == o1b.dtype == x1.dtype
    assert jnp.array_equal(o1a, r1) and jnp.array_equal(o1b, r1)

    # 2) bf16, full-extent-L Pallas path (one contiguous DMA per row block,
    #    no masked L tail, no host-side dtype casts).
    x2 = jax.random.normal(k2, (2, 8, 384), dtype=jnp.bfloat16)
    o2 = jax.block_until_ready(chomp1d(x2, 5))
    assert o2.shape == (2, 8, 379) and o2.dtype == jnp.bfloat16
    assert jnp.array_equal(o2, _reference(x2, 5))

    # 3) f32 with enough rows that the row axis splits into >=2 parallel
    #    blocks (feeds both TensorCores on v7x).
    x3 = jax.random.normal(k3, (4, 16, 1024), dtype=jnp.float32)
    o3 = jax.block_until_ready(chomp1d(x3, 7))
    assert o3.shape == (4, 16, 1017) and o3.dtype == x3.dtype
    assert jnp.array_equal(o3, _reference(x3, 7))

    # 4) Exercise the long-sequence L-tiled fallback (forced at a small shape
    #    so the script stays fast); includes a masked partial last L tile.
    x4 = jax.random.normal(k4, (2, 8, 512), dtype=jnp.float32)
    o4 = jax.block_until_ready(
        chomp1d(x4, 5, target_block_bytes=8 * 1024, _force_l_tiling=True))
    assert o4.shape == (2, 8, 507) and o4.dtype == x4.dtype
    assert jnp.array_equal(o4, _reference(x4, 5))

    print("KERNEL_OK")
</pallas_src>

<mosaic_0001>
module attributes {stable_mosaic.version = 11 : i64} {
  func.func @_chomp_copy_kernel(%arg0: i32, %arg1: memref<8x16xf32, #tpu.memory_space<vmem>>, %arg2: memref<8x13xf32, #tpu.memory_space<vmem>>) attributes {dimension_semantics = [#tpu.dimension_semantics<parallel>], iteration_bounds = array<i64: 1>, scalar_prefetch = 0 : i64, scratch_operands = 0 : i64, tpu.core_type = #tpu.core_type<tc>, window_params = [{transform_indices = @transform_0, window_bounds = array<i64: 8, 16>}, {transform_indices = @transform_1, window_bounds = array<i64: 8, 13>}]} {
    %c0 = arith.constant 0 : index
    %c0_0 = arith.constant 0 : index
    %0 = vector.load %arg1[%c0, %c0_0] : memref<8x16xf32, #tpu.memory_space<vmem>>, vector<8x13xf32>
    %c0_1 = arith.constant 0 : index
    %c0_2 = arith.constant 0 : index
    %1 = vector.load %arg2[%c0_1, %c0_2] : memref<8x13xf32, #tpu.memory_space<vmem>>, vector<8x13xf32>
    tpu.vector_store %arg2[%c0_1, %c0_2], %0 {strides = array<i32>} : memref<8x13xf32, #tpu.memory_space<vmem>>, vector<8x13xf32>,
    return
  }
  func.func @transform_0(%arg0: i32) -> (i32, i32) {
    %c0_i32 = arith.constant 0 : i32
    %c0_i32_0 = arith.constant 0 : i32
    return %arg0, %c0_i32 : i32, i32
  }
  func.func @transform_1(%arg0: i32) -> (i32, i32) {
    %c0_i32 = arith.constant 0 : i32
    %c0_i32_0 = arith.constant 0 : i32
    return %arg0, %c0_i32 : i32, i32
  }
}

</mosaic_0001>

<llo_original>
// kernel: tpu_custom_call.1
$region0: #{tpu_custom_call.1}
  #allocation0 [shape = 'u32[]', space=smem, size = 0x4, offset = 0x4, fixed_abs, tag = 'smem constant byte address 0x4 - core index']
  #allocation1 [shape = 'u32[72,128]{1,0:T(1,128)}', space=vmem, size = 0x9000, scoped, tag = 'internal scratch']
  %s0 = inlined_call_operand.hbm [shape: f32[8,16], index: 0, kind: input, shape index: {}]
  %s1 = inlined_call_operand.hbm [shape: f32[8,13], index: 1, kind: output, shape index: {}]
  %s2 = sld [smem:[#allocation0]]
  $region18: #{tpu_custom_call.1} parent=0
    _
  %s4 = ssub.s32 1, %s2
  %s5 = scalar_select 0, %s4, %s2
  $region1: #{tpu_custom_call.1} parent=0
    #allocation2 [shape = 'u8[4096]{0}', space=vmem, size = 0x1000, scoped, tag = 'input window, operand 0, single buffered']
    #allocation3 [shape = 's32[1]{0}', space=sflag, size = 0x4, scoped, tag = 'scoped memory for tpu_custom_call.1']
    #allocation4 [shape = 's32[1]{0}', space=sflag, size = 0x4, scoped, tag = 'scoped memory for tpu_custom_call.1']
    #allocation5 [shape = 'u8[4096]{0}', space=vmem, size = 0x1000, scoped, tag = 'output window, operand 0, single buffered']
    %6 = vsyncpa [#allocation3], 0
    %7 = vsyncpa [#allocation4], 0
    // Predicated region
    $region2: #{tpu_custom_call.1} parent=1 // pred_check
      _
    $region3: #{tpu_custom_call.1} parent=1 // pred_check_branch
      %9 = sbr.rel (0) target = $region5
    $region4: #{tpu_custom_call.1} parent=1 // pred_region
      %11 = vsyncadd [#allocation3], 0
      %s13 = sshll.u32 %s0, 4
      %s14 = int_to_ptr.hbm [resolvable:$true] %s13
      %s15 = sshll.u32 [#allocation2], 4
      %s16 = int_to_ptr.vmem [resolvable:$true] %s15
      %18 = dma.hbm_to_vmem [thread:$0]  %s14, 128, %s16, [#allocation3]
    $region5: #{tpu_custom_call.1} parent=1 // pred_fallthru
      _
    // Predicated region
    $region6: #{tpu_custom_call.1} parent=1 // pred_check
      _
    $region7: #{tpu_custom_call.1} parent=1 // pred_check_branch
      %20 = sbr.rel (0) target = $region9
    $region8: #{tpu_custom_call.1} parent=1 // pred_region
      %22 = dma.done [#allocation3], 128
    $region9: #{tpu_custom_call.1} parent=1 // pred_fallthru
      _
    %v23 = vld [vmem:[#allocation2] sm:$0xff]
    %vm24 = vcmask 105472
    %25 = vst.msk [vmem:[#allocation5] sm:$0xff] %vm24, %v23
    // Predicated region
    $region10: #{tpu_custom_call.1} parent=1 // pred_check
      _
    $region11: #{tpu_custom_call.1} parent=1 // pred_check_branch
      %27 = sbr.rel (0) target = $region13
    $region12: #{tpu_custom_call.1} parent=1 // pred_region
      %29 = vsyncadd [#allocation4], 0
      %s31 = sshll.u32 [#allocation5], 4
      %s32 = int_to_ptr.vmem [resolvable:$true] %s31
      %s33 = sshll.u32 %s1, 4
      %s34 = int_to_ptr.hbm [resolvable:$true] %s33
      %36 = dma.vmem_to_hbm [thread:$0]  %s32, 128, %s34, [#allocation4]
    $region13: #{tpu_custom_call.1} parent=1 // pred_fallthru
      _
    // Predicated region
    $region14: #{tpu_custom_call.1} parent=1 // pred_check
      _
    $region15: #{tpu_custom_call.1} parent=1 // pred_check_branch
      %38 = sbr.rel (0) target = $region17
    $region16: #{tpu_custom_call.1} parent=1 // pred_region
      %40 = dma.done [#allocation4], 128
    $region17: #{tpu_custom_call.1} parent=1 // pred_fallthru
      _
    %41 = vsyncpa [#allocation3], 1
    %42 = vsyncpa [#allocation4], 1

</llo_original>
